<compile_context>
chip_gen: v7x
topology: tpu7x:2x2x1
jax: 0.10.0
libtpu: 0.0.40
codegen_flags: <defaults>
</compile_context>

<pallas_src>
import math

import jax
import jax.numpy as jnp
import numpy as np
from jax.experimental import pallas as pl
from jax.experimental.pallas import tpu as pltpu

DIMS = (32, 16, 8)   # encoder dims
LATENT = 8           # latent_dim
K = 2                # n_clusters

_LOG_2PI = math.log(2.0 * math.pi)

# ---- packed parameter slab layout (rows, lanes), all row starts 8-aligned ----
P_ROWS = 128
P_LANES = 128
# ew0   [  0: 32, 0:16]   encoder hidden Linear(32,16) weight
# eb0   [ 32: 33, 0:16]   encoder hidden bias
# whead [ 40: 56, 0:16]   fused [wmu | wls] Linear(16, 8+8) weight
# bhead [ 56: 57, 0:16]   fused [bmu | bls] bias
# dw0   [ 64: 72, 0:16]   decoder Linear(8,16) weight
# db0   [ 72: 73, 0:16]   decoder bias
# dw1   [ 80: 96, 0:32]   decoder out Linear(16,32) weight
# db1   [ 96: 97, 0:32]   decoder out bias
# muc   [104:106, 0: 8]   GMM cluster means (K, L)
# invsc [112:114, 0: 8]   exp(-0.5*logvar_c)  (K, L)
# const [120:121, 0: 2]   per-cluster constant + log_pi  (1, K)

# ---- packed output layout: (rows, 64) lane-dense slab ----
# recon 0:32 | mu 32:40 | log_sigma 40:48 | z 48:56 | -logsumexp 56:57 | pad
OUT_LANES = 64
_USED_LANES = DIMS[0] + 2 * LATENT + LATENT + 1   # 57


def _round_up(n, m):
    return ((n + m - 1) // m) * m


def _vae_kernel(x_ref, eps_ref, p_ref, out_ref):
    x = x_ref[...]        # (TB, 32)
    eps = eps_ref[...]    # (TB, 8)
    tb = x.shape[0]

    # ---------------- Encoder ----------------
    ew0 = p_ref[0:32, 0:16]
    eb0 = p_ref[32:33, 0:16]
    h = jnp.maximum(
        jnp.dot(x, ew0, preferred_element_type=jnp.float32) + eb0, 0.0)

    # fused mu / log_sigma head: one matmul, static split
    whead = p_ref[40:56, 0:16]
    bhead = p_ref[56:57, 0:16]
    head = jnp.dot(h, whead, preferred_element_type=jnp.float32) + bhead  # (TB,16)
    mu = head[:, 0:LATENT]
    ls = head[:, LATENT:2 * LATENT]

    # -------- Reparameterization: z = mu + exp(0.5*log_sigma)*eps --------
    z = mu + jnp.exp(0.5 * ls) * eps

    # ------- GMM loss, per-row -logsumexp (constants precomputed host-side) -------
    muc = p_ref[104:106, 0:LATENT]     # (K, L)
    invsc = p_ref[112:114, 0:LATENT]   # (K, L) == exp(-0.5*logvar_c)
    const = p_ref[120:121, 0:K]        # (1, K)
    log_qs = []
    for k in range(K):                 # K=2, static unroll (no (TB,K,L) temporaries)
        diff = (z - muc[k:k + 1, :]) * invsc[k:k + 1, :]
        log_qs.append(
            -0.5 * jnp.sum(diff * diff, axis=-1, keepdims=True)
            + const[:, k:k + 1])       # (TB, 1)
    neg_lse = -jnp.logaddexp(log_qs[0], log_qs[1])   # (TB, 1)

    # ---------------- Decoder ----------------
    dw0 = p_ref[64:72, 0:16]
    db0 = p_ref[72:73, 0:16]
    d = jnp.maximum(
        jnp.dot(z, dw0, preferred_element_type=jnp.float32) + db0, 0.0)
    dw1 = p_ref[80:96, 0:32]
    db1 = p_ref[96:97, 0:32]
    recon = jnp.dot(d, dw1, preferred_element_type=jnp.float32) + db1  # (TB, 32)

    # ------- Single full-width register-assembled store (no masked stores) -------
    pad = jnp.zeros((tb, OUT_LANES - _USED_LANES), jnp.float32)
    out_ref[...] = jnp.concatenate([recon, head, z, neg_lse, pad], axis=1)


def pack_params(p):
    """Pack parameters + precomputed GMM constants into one (128,128) f32 slab.

    Done once (outside the per-step path); re-run if parameters change.
    """
    log_pi = jax.nn.log_softmax(p["pi"][0])                       # (K,)
    inv_sc = jnp.exp(-0.5 * p["logvarc"])                         # (K, L)
    const = (jnp.sum(-0.5 * p["logvarc"], axis=1)
             - 0.5 * LATENT * _LOG_2PI + log_pi)                  # (K,)
    whead = jnp.concatenate([p["wmu"], p["wls"]], axis=1)         # (16, 16)
    bhead = jnp.concatenate([p["bmu"], p["bls"]], axis=1)         # (1, 16)

    slab = jnp.zeros((P_ROWS, P_LANES), jnp.float32)
    slab = slab.at[0:32, 0:16].set(p["ew0"])
    slab = slab.at[32, 0:16].set(p["eb0"][0])
    slab = slab.at[40:56, 0:16].set(whead)
    slab = slab.at[56, 0:16].set(bhead[0])
    slab = slab.at[64:72, 0:16].set(p["dw0"])
    slab = slab.at[72, 0:16].set(p["db0"][0])
    slab = slab.at[80:96, 0:32].set(p["dw1"])
    slab = slab.at[96, 0:32].set(p["db1"][0])
    slab = slab.at[104:106, 0:LATENT].set(p["muc"])
    slab = slab.at[112:114, 0:LATENT].set(inv_sc)
    slab = slab.at[120, 0:K].set(const)
    return slab


def vae_forward(x, packed_params, eps, *, row_tile=512):
    """Returns (reconstruction, mu, log_sigma, z, gmm_loss) like VAE.forward.

    Rows are tiled along a batch grid axis; the param slab stays VMEM-resident
    across grid steps (constant index_map). Works for any batch size; padding
    rows (if any) are excluded from the returned tensors and from the loss.
    """
    b = x.shape[0]
    tb = min(row_tile, _round_up(b, 8))          # tile rows, multiple of 8
    bp = _round_up(b, tb)                        # padded batch
    if bp != b:
        x = jnp.pad(x, ((0, bp - b), (0, 0)))
        eps = jnp.pad(eps, ((0, bp - b), (0, 0)))

    flops = 2 * bp * (DIMS[0] * DIMS[1] + DIMS[1] * 2 * LATENT
                      + LATENT * DIMS[1] + DIMS[1] * DIMS[0]) \
        + bp * (4 * K * LATENT)
    cost = pl.CostEstimate(
        flops=flops,
        transcendentals=bp * (LATENT + K + 2),
        bytes_accessed=bp * (DIMS[0] + LATENT + OUT_LANES) * 4
        + P_ROWS * P_LANES * 4)

    out = pl.pallas_call(
        _vae_kernel,
        out_shape=jax.ShapeDtypeStruct((bp, OUT_LANES), jnp.float32),
        grid=(bp // tb,),
        in_specs=[
            pl.BlockSpec((tb, DIMS[0]), lambda i: (i, 0)),
            pl.BlockSpec((tb, LATENT), lambda i: (i, 0)),
            pl.BlockSpec((P_ROWS, P_LANES), lambda i: (0, 0)),  # resident slab
        ],
        out_specs=pl.BlockSpec((tb, OUT_LANES), lambda i: (i, 0)),
        compiler_params=pltpu.CompilerParams(
            dimension_semantics=("parallel",)),
        cost_estimate=cost,
    )(x, eps, packed_params)

    out = out[:b]
    recon = out[:, 0:32]
    mu = out[:, 32:40]
    ls = out[:, 40:48]
    z = out[:, 48:56]
    loss = jnp.mean(out[:, 56])                  # mean over true batch only
    return recon, mu, ls, z, loss


def init_params(key):
    ks = jax.random.split(key, 8)

    def lin(k, n_in, n_out):
        # weights_init_uniform_rule: U(-1/sqrt(n_in), 1/sqrt(n_in)), bias = 0
        bound = 1.0 / math.sqrt(n_in)
        w = jax.random.uniform(k, (n_in, n_out), jnp.float32, -bound, bound)
        b = jnp.zeros((1, n_out), jnp.float32)
        return w, b

    ew0, eb0 = lin(ks[0], DIMS[0], DIMS[1])
    wmu, bmu = lin(ks[1], DIMS[-2], LATENT)
    wls, bls = lin(ks[2], DIMS[-2], LATENT)
    dw0, db0 = lin(ks[3], LATENT, DIMS[-2])
    dw1, db1 = lin(ks[4], DIMS[-2], DIMS[0])
    muc = jax.random.normal(ks[5], (K, LATENT), jnp.float32)
    logvarc = jax.random.normal(ks[6], (K, LATENT), jnp.float32)
    pi = jax.random.normal(ks[7], (1, K), jnp.float32)
    return dict(ew0=ew0, eb0=eb0, wmu=wmu, bmu=bmu, wls=wls, bls=bls,
                dw0=dw0, db0=db0, dw1=dw1, db1=db1,
                muc=muc, logvarc=logvarc, pi=pi)


def vae_ref(x, p, eps):
    """Pure-JAX reference mirroring the PyTorch forward (eval mode, no bn)."""
    h = jax.nn.relu(x @ p["ew0"] + p["eb0"])
    mu = h @ p["wmu"] + p["bmu"]
    ls = h @ p["wls"] + p["bls"]
    z = mu + jnp.exp(0.5 * ls) * eps
    log_pi = jax.nn.log_softmax(p["pi"][0])
    scale = jnp.exp(0.5 * p["logvarc"])
    lp = (-0.5 * ((z[:, None, :] - p["muc"]) / scale) ** 2
          - jnp.log(scale) - 0.5 * _LOG_2PI)
    log_q = lp.sum(-1) + log_pi
    loss = -jax.scipy.special.logsumexp(log_q, axis=1).mean()
    d = jax.nn.relu(z @ p["dw0"] + p["db0"])
    recon = d @ p["dw1"] + p["db1"]
    return recon, mu, ls, z, loss


if __name__ == "__main__":
    key = jax.random.PRNGKey(0)
    k_x, k_eps, k_p = jax.random.split(key, 3)
    B = 20  # small, deliberately not a multiple of the row tile -> exercises padding
    x = jax.random.normal(k_x, (B, DIMS[0]), jnp.float32)
    # TODO(synk): torch.randn eps inside sample_z is generated outside the kernel
    # with jax.random (deterministic), matching semantics up to RNG stream.
    eps = jax.random.normal(k_eps, (B, LATENT), jnp.float32)
    params = init_params(k_p)
    packed = jax.block_until_ready(pack_params(params))

    # Small row_tile here to exercise a multi-step grid (3 steps) + resident slab;
    # production calls use the default 512-row tiles.
    outs = vae_forward(x, packed, eps, row_tile=8)
    outs = jax.block_until_ready(outs)

    refs = vae_ref(x, params, eps)
    for o, r in zip(outs, refs):
        np.testing.assert_allclose(np.asarray(o), np.asarray(r),
                                   rtol=1e-4, atol=1e-5)
    print("KERNEL_OK")
</pallas_src>

<mosaic_0001>
module attributes {stable_mosaic.version = 11 : i64} {
  func.func @_vae_kernel(%arg0: i32, %arg1: memref<8x32xf32, #tpu.memory_space<vmem>>, %arg2: memref<8x8xf32, #tpu.memory_space<vmem>>, %arg3: memref<128x128xf32, #tpu.memory_space<vmem>>, %arg4: memref<8x64xf32, #tpu.memory_space<vmem>>) attributes {dimension_semantics = [#tpu.dimension_semantics<parallel>], iteration_bounds = array<i64: 3>, scalar_prefetch = 0 : i64, scratch_operands = 0 : i64, tpu.core_type = #tpu.core_type<tc>, window_params = [{transform_indices = @transform_0, window_bounds = array<i64: 8, 32>}, {transform_indices = @transform_1, window_bounds = array<i64: 8, 8>}, {pipeline_mode = #tpu.pipeline_mode<synchronous>, transform_indices = @transform_2, window_bounds = array<i64: 128, 128>}, {transform_indices = @transform_3, window_bounds = array<i64: 8, 64>}]} {
    %c0 = arith.constant 0 : index
    %c0_0 = arith.constant 0 : index
    %0 = vector.load %arg1[%c0, %c0_0] : memref<8x32xf32, #tpu.memory_space<vmem>>, vector<8x32xf32>
    %c0_1 = arith.constant 0 : index
    %c0_2 = arith.constant 0 : index
    %1 = vector.load %arg2[%c0_1, %c0_2] : memref<8x8xf32, #tpu.memory_space<vmem>>, vector<8x8xf32>
    %c0_3 = arith.constant 0 : index
    %c0_4 = arith.constant 0 : index
    %2 = vector.load %arg3[%c0_3, %c0_4] : memref<128x128xf32, #tpu.memory_space<vmem>>, vector<32x16xf32>
    %c32 = arith.constant 32 : index
    %c0_5 = arith.constant 0 : index
    %3 = vector.load %arg3[%c32, %c0_5] : memref<128x128xf32, #tpu.memory_space<vmem>>, vector<1x16xf32>
    %cst = arith.constant dense<0.000000e+00> : vector<8x16xf32>
    %4 = tpu.matmul %0, %2, %cst {dimension_numbers = #tpu.dot_dimension_numbers<[1], [0], [0], [1], [0, 0, 1, 1], [], []>} : vector<8x32xf32>, vector<32x16xf32>, vector<8x16xf32> -> vector<8x16xf32>
    %5 = vector.broadcast %3 : vector<1x16xf32> to vector<8x16xf32>
    %6 = arith.addf %4, %5 : vector<8x16xf32>
    %cst_6 = arith.constant 0.000000e+00 : f32
    %7 = vector.broadcast %cst_6 : f32 to vector<8x16xf32>
    %8 = arith.maximumf %6, %7 : vector<8x16xf32>
    %c40 = arith.constant 40 : index
    %c0_7 = arith.constant 0 : index
    %9 = vector.load %arg3[%c40, %c0_7] : memref<128x128xf32, #tpu.memory_space<vmem>>, vector<16x16xf32>
    %c56 = arith.constant 56 : index
    %c0_8 = arith.constant 0 : index
    %10 = vector.load %arg3[%c56, %c0_8] : memref<128x128xf32, #tpu.memory_space<vmem>>, vector<1x16xf32>
    %cst_9 = arith.constant dense<0.000000e+00> : vector<8x16xf32>
    %11 = tpu.matmul %8, %9, %cst_9 {dimension_numbers = #tpu.dot_dimension_numbers<[1], [0], [0], [1], [0, 0, 1, 1], [], []>} : vector<8x16xf32>, vector<16x16xf32>, vector<8x16xf32> -> vector<8x16xf32>
    %12 = vector.broadcast %10 : vector<1x16xf32> to vector<8x16xf32>
    %13 = arith.addf %11, %12 : vector<8x16xf32>
    %14 = vector.extract_strided_slice %13 {offsets = [0, 0], sizes = [8, 8], strides = [1, 1]} : vector<8x16xf32> to vector<8x8xf32>
    %15 = vector.extract_strided_slice %13 {offsets = [0, 8], sizes = [8, 8], strides = [1, 1]} : vector<8x16xf32> to vector<8x8xf32>
    %cst_10 = arith.constant 5.000000e-01 : f32
    %16 = vector.broadcast %cst_10 : f32 to vector<8x8xf32>
    %17 = arith.mulf %16, %15 : vector<8x8xf32>
    %18 = math.exp %17 : vector<8x8xf32>
    %19 = arith.mulf %18, %1 : vector<8x8xf32>
    %20 = arith.addf %14, %19 : vector<8x8xf32>
    %c104 = arith.constant 104 : index
    %c0_11 = arith.constant 0 : index
    %21 = vector.load %arg3[%c104, %c0_11] : memref<128x128xf32, #tpu.memory_space<vmem>>, vector<2x8xf32>
    %c112 = arith.constant 112 : index
    %c0_12 = arith.constant 0 : index
    %22 = vector.load %arg3[%c112, %c0_12] : memref<128x128xf32, #tpu.memory_space<vmem>>, vector<2x8xf32>
    %c120 = arith.constant 120 : index
    %c0_13 = arith.constant 0 : index
    %23 = vector.load %arg3[%c120, %c0_13] : memref<128x128xf32, #tpu.memory_space<vmem>>, vector<1x2xf32>
    %24 = vector.extract_strided_slice %21 {offsets = [0, 0], sizes = [1, 8], strides = [1, 1]} : vector<2x8xf32> to vector<1x8xf32>
    %25 = vector.broadcast %24 : vector<1x8xf32> to vector<8x8xf32>
    %26 = arith.subf %20, %25 : vector<8x8xf32>
    %27 = vector.extract_strided_slice %22 {offsets = [0, 0], sizes = [1, 8], strides = [1, 1]} : vector<2x8xf32> to vector<1x8xf32>
    %28 = vector.broadcast %27 : vector<1x8xf32> to vector<8x8xf32>
    %29 = arith.mulf %26, %28 : vector<8x8xf32>
    %30 = arith.mulf %29, %29 : vector<8x8xf32>
    %cst_14 = arith.constant dense<0.000000e+00> : vector<8xf32>
    %31 = vector.multi_reduction <add>, %30, %cst_14 [1] : vector<8x8xf32> to vector<8xf32>
    %32 = vector.shape_cast %31 : vector<8xf32> to vector<8x1xf32>
    %cst_15 = arith.constant -5.000000e-01 : f32
    %33 = vector.broadcast %cst_15 : f32 to vector<8x1xf32>
    %34 = arith.mulf %33, %32 : vector<8x1xf32>
    %35 = vector.extract_strided_slice %23 {offsets = [0, 0], sizes = [1, 1], strides = [1, 1]} : vector<1x2xf32> to vector<1x1xf32>
    %36 = vector.broadcast %35 : vector<1x1xf32> to vector<8x1xf32>
    %37 = arith.addf %34, %36 : vector<8x1xf32>
    %38 = vector.extract_strided_slice %21 {offsets = [1, 0], sizes = [1, 8], strides = [1, 1]} : vector<2x8xf32> to vector<1x8xf32>
    %39 = vector.broadcast %38 : vector<1x8xf32> to vector<8x8xf32>
    %40 = arith.subf %20, %39 : vector<8x8xf32>
    %41 = vector.extract_strided_slice %22 {offsets = [1, 0], sizes = [1, 8], strides = [1, 1]} : vector<2x8xf32> to vector<1x8xf32>
    %42 = vector.broadcast %41 : vector<1x8xf32> to vector<8x8xf32>
    %43 = arith.mulf %40, %42 : vector<8x8xf32>
    %44 = arith.mulf %43, %43 : vector<8x8xf32>
    %cst_16 = arith.constant dense<0.000000e+00> : vector<8xf32>
    %45 = vector.multi_reduction <add>, %44, %cst_16 [1] : vector<8x8xf32> to vector<8xf32>
    %46 = vector.shape_cast %45 : vector<8xf32> to vector<8x1xf32>
    %cst_17 = arith.constant -5.000000e-01 : f32
    %47 = vector.broadcast %cst_17 : f32 to vector<8x1xf32>
    %48 = arith.mulf %47, %46 : vector<8x1xf32>
    %49 = vector.extract_strided_slice %23 {offsets = [0, 1], sizes = [1, 1], strides = [1, 1]} : vector<1x2xf32> to vector<1x1xf32>
    %50 = vector.broadcast %49 : vector<1x1xf32> to vector<8x1xf32>
    %51 = arith.addf %48, %50 : vector<8x1xf32>
    %52 = arith.maximumf %37, %51 : vector<8x1xf32>
    %53 = arith.subf %37, %51 : vector<8x1xf32>
    %54 = arith.cmpf one, %53, %53 : vector<8x1xf32>
    %55 = arith.addf %37, %51 : vector<8x1xf32>
    %56 = math.absf %53 : vector<8x1xf32>
    %cst_18 = arith.constant 0.000000e+00 : f32
    %57 = vector.broadcast %cst_18 : f32 to vector<8x1xf32>
    %58 = arith.subf %57, %56 : vector<8x1xf32>
    %59 = math.exp %58 : vector<8x1xf32>
    %60 = math.log1p %59 : vector<8x1xf32>
    %61 = arith.addf %52, %60 : vector<8x1xf32>
    %62 = arith.select %54, %55, %61 : vector<8x1xi1>, vector<8x1xf32>
    %cst_19 = arith.constant 0.000000e+00 : f32
    %63 = vector.broadcast %cst_19 : f32 to vector<8x1xf32>
    %64 = arith.subf %63, %62 : vector<8x1xf32>
    %c64 = arith.constant 64 : index
    %c0_20 = arith.constant 0 : index
    %65 = vector.load %arg3[%c64, %c0_20] : memref<128x128xf32, #tpu.memory_space<vmem>>, vector<8x16xf32>
    %c72 = arith.constant 72 : index
    %c0_21 = arith.constant 0 : index
    %66 = vector.load %arg3[%c72, %c0_21] : memref<128x128xf32, #tpu.memory_space<vmem>>, vector<1x16xf32>
    %cst_22 = arith.constant dense<0.000000e+00> : vector<8x16xf32>
    %67 = tpu.matmul %20, %65, %cst_22 {dimension_numbers = #tpu.dot_dimension_numbers<[1], [0], [0], [1], [0, 0, 1, 1], [], []>} : vector<8x8xf32>, vector<8x16xf32>, vector<8x16xf32> -> vector<8x16xf32>
    %68 = vector.broadcast %66 : vector<1x16xf32> to vector<8x16xf32>
    %69 = arith.addf %67, %68 : vector<8x16xf32>
    %cst_23 = arith.constant 0.000000e+00 : f32
    %70 = vector.broadcast %cst_23 : f32 to vector<8x16xf32>
    %71 = arith.maximumf %69, %70 : vector<8x16xf32>
    %c80 = arith.constant 80 : index
    %c0_24 = arith.constant 0 : index
    %72 = vector.load %arg3[%c80, %c0_24] : memref<128x128xf32, #tpu.memory_space<vmem>>, vector<16x32xf32>
    %c96 = arith.constant 96 : index
    %c0_25 = arith.constant 0 : index
    %73 = vector.load %arg3[%c96, %c0_25] : memref<128x128xf32, #tpu.memory_space<vmem>>, vector<1x32xf32>
    %cst_26 = arith.constant dense<0.000000e+00> : vector<8x32xf32>
    %74 = tpu.matmul %71, %72, %cst_26 {dimension_numbers = #tpu.dot_dimension_numbers<[1], [0], [0], [1], [0, 0, 1, 1], [], []>} : vector<8x16xf32>, vector<16x32xf32>, vector<8x32xf32> -> vector<8x32xf32>
    %75 = vector.broadcast %73 : vector<1x32xf32> to vector<8x32xf32>
    %76 = arith.addf %74, %75 : vector<8x32xf32>
    %cst_27 = arith.constant 0.000000e+00 : f32
    %77 = vector.broadcast %cst_27 : f32 to vector<8x7xf32>
    %78 = tpu.concatenate %76, %13, %20, %64, %77 in 1 : vector<8x32xf32>, vector<8x16xf32>, vector<8x8xf32>, vector<8x1xf32>, vector<8x7xf32> -> vector<8x64xf32>
    %c0_28 = arith.constant 0 : index
    %c0_29 = arith.constant 0 : index
    %79 = vector.load %arg4[%c0_28, %c0_29] : memref<8x64xf32, #tpu.memory_space<vmem>>, vector<8x64xf32>
    tpu.vector_store %arg4[%c0_28, %c0_29], %78 {strides = array<i32>} : memref<8x64xf32, #tpu.memory_space<vmem>>, vector<8x64xf32>,
    return
  }
  func.func @transform_0(%arg0: i32) -> (i32, i32) {
    %c0_i32 = arith.constant 0 : i32
    %c0_i32_0 = arith.constant 0 : i32
    return %arg0, %c0_i32 : i32, i32
  }
  func.func @transform_1(%arg0: i32) -> (i32, i32) {
    %c0_i32 = arith.constant 0 : i32
    %c0_i32_0 = arith.constant 0 : i32
    return %arg0, %c0_i32 : i32, i32
  }
  func.func @transform_2(%arg0: i32) -> (i32, i32) {
    %c0_i32 = arith.constant 0 : i32
    %c0_i32_0 = arith.constant 0 : i32
    %c0_i32_1 = arith.constant 0 : i32
    return %c0_i32, %c0_i32_0 : i32, i32
  }
  func.func @transform_3(%arg0: i32) -> (i32, i32) {
    %c0_i32 = arith.constant 0 : i32
    %c0_i32_0 = arith.constant 0 : i32
    return %arg0, %c0_i32 : i32, i32
  }
}

</mosaic_0001>

<llo_original>
// kernel: tpu_custom_call.1
$region0: #{tpu_custom_call.1}
  #allocation0 [shape = 'u32[]', space=smem, size = 0x4, offset = 0x4, fixed_abs, tag = 'smem constant byte address 0x4 - core index']
  #allocation1 [shape = 'u32[144,128]{1,0:T(1,128)}', space=vmem, size = 0x12000, scoped, tag = 'internal scratch']
  %s0 = inlined_call_operand.vmem [shape: f32[24,32], index: 0, kind: input, shape index: {}]
  %s1 = inlined_call_operand.vmem [shape: f32[24,8], index: 1, kind: input, shape index: {}]
  %s2 = inlined_call_operand.hbm [shape: f32[128,128], index: 2, kind: input, shape index: {}]
  %s3 = inlined_call_operand.hbm [shape: f32[24,64], index: 3, kind: output, shape index: {}]
  %s4 = sld [smem:[#allocation0]]
  $region49: #{tpu_custom_call.1} parent=0
    _
  %s6 = ssub.s32 1, %s4
  %s7 = scalar_select 0, %s6, %s4
  $region1: #{tpu_custom_call.1} parent=0
    #allocation2 [shape = 'u8[65536]{0}', space=vmem, size = 0x10000, scoped, tag = 'input window, operand 2, single buffered']
    #allocation3 [shape = 's32[2]{0}', space=sflag, size = 0x8, scoped, tag = 'scoped memory for tpu_custom_call.1']
    #allocation4 [shape = 's32[2]{0}', space=sflag, size = 0x8, scoped, tag = 'scoped memory for tpu_custom_call.1']
    #allocation5 [shape = 'u8[8192]{0}', space=vmem, size = 0x2000, scoped, tag = 'output window, operand 0']
    %8 = vsyncpa [#allocation3], 0
    %9 = vsyncpa [#allocation4], 0
    %s10 = scalar_lea.sflag [#allocation4], 1
    %11 = vsyncpa %s10, 0
    loop: start=0, step=1, limit=5
    $region2: #{tpu_custom_call.1} parent=1 // loop_pre_header
      _
    $region3: #{tpu_custom_call.1} parent=1 // loop_header
      %s13 = sphi 0, %s17
      %p14 = scmp.ge.s32.totalorder %s13, 5
      %s23 = sphi 0, %s25
      %s26 = sphi 0, %s23
      %s27 = sphi 0, %s26
      %s43 = sphi 0, %s27
      %s49 = sphi 0, %s51
      %s52 = sphi 0, %s49
      %s53 = sphi 0, %s52
      %s69 = sphi 0, %s53
      %s73 = sphi 0, %s73
      %s75 = sphi 0, %s73
      %s76 = sphi 0, %s75
      %s90 = sphi 0, %s76
      %s96 = sphi 0, %s98
      %s99 = sphi 0, %s96
      %s100 = sphi 0, %s99
      %s116 = sphi 0, %s100
    $region4: #{tpu_custom_call.1} parent=1 // loop_header_branch
      %16 = sbr.rel (%p14) target = $region8
    $region5: #{tpu_custom_call.1} parent=1 // loop_body
      %s18 = ssub.s32 %s13, 1
      %s19 = ssub.s32 %s13, 2
      %s20 = sadd.s32 %s13, 1
      %s21 = ssub.s32 %s13, %s20
      %p22 = scmp.eq.s32.totalorder %s21, 0
      %s24 = sadd.s32 %s23, 1
      %s25 = scalar_select %p22, %s23, %s24
      %p28 = pneg %p22
      %p29 = scmp.eq.s32.totalorder %s13, 2
      %p30 = por %p28, %p29
      %p31 = scmp.ne.s32.totalorder %s23, %s26
      %p32 = scmp.eq.s32.totalorder %s13, 0
      %p33 = por %p31, %p32
      %p34 = scmp.ne.s32.totalorder %s23, %s26
      %p35 = scmp.eq.s32.totalorder %s18, 2
      %p36 = por %p34, %p35
      %p37 = scmp.ne.s32.totalorder %s26, %s27
      %p38 = scmp.eq.s32.totalorder %s18, 0
      %p39 = por %p37, %p38
      %p40 = scmp.ne.s32.totalorder %s26, %s27
      %p41 = scmp.eq.s32.totalorder %s19, 2
      %p42 = por %p40, %p41
      %p44 = scmp.ne.s32.totalorder %s27, %s43
      %p45 = scmp.eq.s32.totalorder %s19, 0
      %p46 = por %p44, %p45
      %s47 = ssub.s32 %s13, %s20
      %p48 = scmp.eq.s32.totalorder %s47, 0
      %s50 = sadd.s32 %s49, 1
      %s51 = scalar_select %p48, %s49, %s50
      %p54 = pneg %p48
      %p55 = scmp.eq.s32.totalorder %s13, 2
      %p56 = por %p54, %p55
      %p57 = scmp.ne.s32.totalorder %s49, %s52
      %p58 = scmp.eq.s32.totalorder %s13, 0
      %p59 = por %p57, %p58
      %p60 = scmp.ne.s32.totalorder %s49, %s52
      %p61 = scmp.eq.s32.totalorder %s18, 2
      %p62 = por %p60, %p61
      %p63 = scmp.ne.s32.totalorder %s52, %s53
      %p64 = scmp.eq.s32.totalorder %s18, 0
      %p65 = por %p63, %p64
      %p66 = scmp.ne.s32.totalorder %s52, %s53
      %p67 = scmp.eq.s32.totalorder %s19, 2
      %p68 = por %p66, %p67
      %p70 = scmp.ne.s32.totalorder %s53, %s69
      %p71 = scmp.eq.s32.totalorder %s19, 0
      %p72 = por %p70, %p71
      %s74 = sadd.s32 %s73, 1
      %p77 = scmp.eq.s32.totalorder %s13, 2
      %p78 = scmp.ne.s32.totalorder %s73, %s75
      %p79 = scmp.eq.s32.totalorder %s13, 0
      %p80 = por %p78, %p79
      %p81 = scmp.ne.s32.totalorder %s73, %s75
      %p82 = scmp.eq.s32.totalorder %s18, 2
      %p83 = por %p81, %p82
      %p84 = scmp.ne.s32.totalorder %s75, %s76
      %p85 = scmp.eq.s32.totalorder %s18, 0
      %p86 = por %p84, %p85
      %p87 = scmp.ne.s32.totalorder %s75, %s76
      %p88 = scmp.eq.s32.totalorder %s19, 2
      %p89 = por %p87, %p88
      %p91 = scmp.ne.s32.totalorder %s76, %s90
      %p92 = scmp.eq.s32.totalorder %s19, 0
      %p93 = por %p91, %p92
      %s94 = ssub.s32 %s13, %s20
      %p95 = scmp.eq.s32.totalorder %s94, 0
      %s97 = sadd.s32 %s96, 1
      %s98 = scalar_select %p95, %s96, %s97
      %p101 = pneg %p95
      %p102 = scmp.eq.s32.totalorder %s13, 2
      %p103 = por %p101, %p102
      %p104 = scmp.ne.s32.totalorder %s96, %s99
      %p105 = scmp.eq.s32.totalorder %s13, 0
      %p106 = por %p104, %p105
      %p107 = scmp.ne.s32.totalorder %s96, %s99
      %p108 = scmp.eq.s32.totalorder %s18, 2
      %p109 = por %p107, %p108
      %p110 = scmp.ne.s32.totalorder %s99, %s100
      %p111 = scmp.eq.s32.totalorder %s18, 0
      %p112 = por %p110, %p111
      %p113 = scmp.ne.s32.totalorder %s99, %s100
      %p114 = scmp.eq.s32.totalorder %s19, 2
      %p115 = por %p113, %p114
      %p117 = scmp.ne.s32.totalorder %s100, %s116
      %p118 = scmp.eq.s32.totalorder %s19, 0
      %p119 = por %p117, %p118
      %p120 = scmp.le.s32.totalorder 1, %s13
      %p121 = scmp.lt.s32.totalorder %s13, 4
      %p122 = pnand %p120, %p121
      %p123 = pneg %p122
      // Predicated region
      $region9: #{tpu_custom_call.1} parent=5 // pred_check
        _
      $region10: #{tpu_custom_call.1} parent=5 // pred_check_branch
        %125 = sbr.rel (%p122) target = $region12
      $region11: #{tpu_custom_call.1} parent=5 // pred_region
        %s126 = ssub.s32 %s13, 1
        // Predicated region
        $region13: #{tpu_custom_call.1} parent=11 // pred_check
          %p127 = pneg %p86
        $region14: #{tpu_custom_call.1} parent=11 // pred_check_branch
          %129 = sbr.rel (%p127) target = $region16
        $region15: #{tpu_custom_call.1} parent=11 // pred_region
          %s131 = ssub.s32 2048, 2048
          %132 = vsyncadd [#allocation3], %s131
          %s133 = sshll.u32 [#allocation2], 4
          %s134 = int_to_ptr.vmem [resolvable:$true] %s133
          %139 = dma.hbm_to_vmem [thread:$0]  %s2, 2048, %s134, [#allocation3], 128, 128, 8
        $region16: #{tpu_custom_call.1} parent=11 // pred_fallthru
          _
      $region12: #{tpu_custom_call.1} parent=5 // pred_fallthru
        _
      %p140 = scmp.lt.s32.totalorder %s13, 3
      // Predicated region
      $region17: #{tpu_custom_call.1} parent=5 // pred_check
        %p141 = pneg %p140
      $region18: #{tpu_custom_call.1} parent=5 // pred_check_branch
        %143 = sbr.rel (%p141) target = $region20
      $region19: #{tpu_custom_call.1} parent=5 // pred_region
        // Predicated region
        $region21: #{tpu_custom_call.1} parent=19 // pred_check
          %p144 = pneg %p33
        $region22: #{tpu_custom_call.1} parent=19 // pred_check_branch
          %146 = sbr.rel (%p144) target = $region24
        $region23: #{tpu_custom_call.1} parent=19 // pred_region
          %p147 = scmp.lt.s32.totalorder %s13, 2
          %s148 = scalar_select %p147, %s13, 2
          %s149 = smul.addr %s148, 8
          %s150 = scalar_lea.vmem %s0, %s149
        $region24: #{tpu_custom_call.1} parent=19 // pred_fallthru
          _
        // Predicated region
        $region25: #{tpu_custom_call.1} parent=19 // pred_check
          %p151 = pneg %p59
        $region26: #{tpu_custom_call.1} parent=19 // pred_check_branch
          %153 = sbr.rel (%p151) target = $region28
        $region27: #{tpu_custom_call.1} parent=19 // pred_region
          %p154 = scmp.lt.s32.totalorder %s13, 2
          %s155 = scalar_select %p154, %s13, 2
          %s156 = smul.addr %s155, 8
          %s157 = scalar_lea.vmem %s1, %s156
        $region28: #{tpu_custom_call.1} parent=19 // pred_fallthru
          _
      $region20: #{tpu_custom_call.1} parent=5 // pred_fallthru
        _
      %p158 = scmp.le.s32.totalorder 1, %s13
      %p159 = scmp.lt.s32.totalorder %s13, 4
      %p160 = pnand %p158, %p159
      %p161 = pneg %p160
      // Predicated region
      $region29: #{tpu_custom_call.1} parent=5 // pred_check
        _
      $region30: #{tpu_custom_call.1} parent=5 // pred_check_branch
        %163 = sbr.rel (%p160) target = $region32
      $region31: #{tpu_custom_call.1} parent=5 // pred_region
        %s164 = ssub.s32 %s13, 1
        // Predicated region
        $region33: #{tpu_custom_call.1} parent=31 // pred_check
          %p165 = pneg %p86
        $region34: #{tpu_custom_call.1} parent=31 // pred_check_branch
          %167 = sbr.rel (%p165) target = $region36
        $region35: #{tpu_custom_call.1} parent=31 // pred_region
          %168 = dma.done [#allocation3], 2048
        $region36: #{tpu_custom_call.1} parent=31 // pred_fallthru
          _
        %p169 = scmp.lt.s32.totalorder %s18, 2
        %s170 = scalar_select %p169, %s18, 2
        %s171 = smul.addr %s170, 8
        %s172 = scalar_lea.vmem %s0, %s171
        %p173 = pneg %p39
        %p174 = pneg %p36
        %p175 = scmp.lt.s32.totalorder %s18, 2
        %s176 = scalar_select %p175, %s18, 2
        %s177 = smul.addr %s176, 8
        %s178 = scalar_lea.vmem %s1, %s177
        %p179 = pneg %p65
        %p180 = pneg %p62
        %p181 = pneg %p86
        %p182 = pneg %p83
        %p183 = pneg %p112
        %p184 = pneg %p109
        %s185 = sand.u32 %s99, 1
        %s186 = scalar_lea.sflag [#allocation4], %s185
        %s187 = sand.u32 %s99, 1
        %s188 = smul.addr %s187, 8
        %s189 = scalar_lea.vmem [#allocation5], %s188
        %p190 = scmp.lt.s32.totalorder %s18, 2
        %s191 = scalar_select %p190, %s18, 2
        %s192 = smul.addr %s191, 8
        %s193 = scalar_lea.vmem %s0, %s192
        %p194 = scmp.lt.s32.totalorder %s18, 2
        %s195 = scalar_select %p194, %s18, 2
        %s196 = smul.addr %s195, 8
        %s197 = scalar_lea.vmem %s1, %s196
        %v198 = vld [vmem:[%s193] sm:$0xff]
        %v199 = vld [vmem:[%s197] sm:$0xff]
        %v200 = vld [vmem:[#allocation2] sm:$0xff]
        %v201 = vld [vmem:[#allocation2 + $0x8] sm:$0xff]
        %v202 = vld [vmem:[#allocation2 + $0x10] sm:$0xff]
        %v203 = vld [vmem:[#allocation2 + $0x18] sm:$0xff]
        %v204 = vld [vmem:[#allocation2 + $0x20] sm:$0x1]
        %v205 = vlaneseq
        %v206 = vshrl.u32 %v205, 7
        %v207 = vsub.s32 0, %v206
        %v208 = vrot.slane %v204, %v207
        %vm209 = vcmask 261120
        %v211 = vsel %vm209, %v198, 0
        %213 = vmatprep.subr.mxu0 0.0
        %214 = vmatpush1.msra.mxu0 %v200
        %215 = vmatprep.subr.mxu0 0.0
        %216 = vmatpush1.msra.mxu0 %v201
        %217 = vmatprep.subr.mxu0 0.0
        %218 = vmatpush1.msra.mxu0 %v202
        %219 = vmatprep.subr.mxu0 0.0
        %220 = vmatpush1.msra.mxu0 %v203
        %221 = vmatprep.subr.mxu0 0.0
        %222 = vmatpush1.msra.mxu0 0.0
        %223 = vmatprep.subr.mxu0 0.0
        %224 = vmatpush1.msra.mxu0 0.0
        %225 = vmatprep.subr.mxu0 0.0
        %226 = vmatpush1.msra.mxu0 0.0
        %227 = vmatprep.subr.mxu0 0.0
        %228 = vmatpush1.msra.mxu0 0.0
        %229 = vmatprep.subr.mxu0 0.0
        %230 = vmatpush1.msra.mxu0 0.0
        %231 = vmatprep.subr.mxu0 0.0
        %232 = vmatpush1.msra.mxu0 0.0
        %233 = vmatprep.subr.mxu0 0.0
        %234 = vmatpush1.msra.mxu0 0.0
        %235 = vmatprep.subr.mxu0 0.0
        %236 = vmatpush1.msra.mxu0 0.0
        %237 = vmatprep.subr.mxu0 0.0
        %238 = vmatpush1.msra.mxu0 0.0
        %239 = vmatprep.subr.mxu0 0.0
        %240 = vmatpush1.msra.mxu0 0.0
        %241 = vmatprep.subr.mxu0 0.0
        %242 = vmatpush1.msra.mxu0 0.0
        %243 = vmatprep.subr.mxu0 0.0
        %244 = vmatpush1.msra.mxu0 0.0
        %245 = vmatprep.subr.mxu0 0.0
        %246 = vmatpush1.msra.mxu0 0.0
        %247 = vmatprep.subr.mxu0 0.0
        %248 = vmatpush1.msra.mxu0 0.0
        %249 = vmatprep.subr.mxu0 0.0
        %250 = vmatpush1.msra.mxu0 0.0
        %251 = vmatprep.subr.mxu0 0.0
        %252 = vmatpush1.msra.mxu0 0.0
        %253 = vmatprep.subr.mxu0 0.0
        %254 = vmatpush1.msra.mxu0 0.0
        %255 = vmatprep.subr.mxu0 0.0
        %256 = vmatpush1.msra.mxu0 0.0
        %257 = vmatprep.subr.mxu0 0.0
        %258 = vmatpush1.msra.mxu0 0.0
        %259 = vmatprep.subr.mxu0 0.0
        %260 = vmatpush1.msra.mxu0 0.0
        %261 = vmatprep.subr.mxu0 0.0
        %262 = vmatpush1.msra.mxu0 0.0
        %263 = vmatprep.subr.mxu0 0.0
        %264 = vmatpush1.msra.mxu0 0.0
        %265 = vmatprep.subr.mxu0 0.0
        %266 = vmatpush1.msra.mxu0 0.0
        %267 = vmatprep.subr.mxu0 0.0
        %268 = vmatpush1.msra.mxu0 0.0
        %269 = vmatprep.subr.mxu0 0.0
        %270 = vmatpush1.msra.mxu0 0.0
        %271 = vmatprep.subr.mxu0 0.0
        %272 = vmatpush1.msra.mxu0 0.0
        %273 = vmatprep.subr.mxu0 0.0
        %274 = vmatpush1.msra.mxu0 0.0
        %275 = vmatprep.subr.mxu0 0.0
        %276 = vmatpush1.msra.mxu0 0.0
        %277 = vmatprep.mubr.f32.mxu0 0.0
        %278 = vmatmul.mubr.f32.gmra.mrb[0].mxu0 %v211
        %v279 = vpop.f32.mrb[0].mxu0
        %v280 = vadd.f32 %v208, %v279
        %v281 = vpop.f32.mrb[0].mxu0
        %282 = vdwg.mxu0
        %v283 = vmax.f32 %v280, 0.0
        %v284 = vld [vmem:[#allocation2 + $0x28] sm:$0xff]
        %v285 = vld [vmem:[#allocation2 + $0x30] sm:$0xff]
        %v286 = vld [vmem:[#allocation2 + $0x38] sm:$0x1]
        %v287 = vlaneseq
        %v288 = vshrl.u32 %v287, 7
        %v289 = vsub.s32 0, %v288
        %v290 = vrot.slane %v286, %v289
        %vm291 = vcmask 130048
        %v293 = vsel %vm291, %v283, 0
        %295 = vmatprep.subr.mxu0 0.0
        %296 = vmatpush1.msra.mxu0 %v284
        %297 = vmatprep.subr.mxu0 0.0
        %298 = vmatpush1.msra.mxu0 %v285
        %299 = vmatprep.subr.mxu0 0.0
        %300 = vmatpush1.msra.mxu0 0.0
        %301 = vmatprep.subr.mxu0 0.0
        %302 = vmatpush1.msra.mxu0 0.0
        %303 = vmatprep.subr.mxu0 0.0
        %304 = vmatpush1.msra.mxu0 0.0
        %305 = vmatprep.subr.mxu0 0.0
        %306 = vmatpush1.msra.mxu0 0.0
        %307 = vmatprep.subr.mxu0 0.0
        %308 = vmatpush1.msra.mxu0 0.0
        %309 = vmatprep.subr.mxu0 0.0
        %310 = vmatpush1.msra.mxu0 0.0
        %311 = vmatprep.subr.mxu0 0.0
        %312 = vmatpush1.msra.mxu0 0.0
        %313 = vmatprep.subr.mxu0 0.0
        %314 = vmatpush1.msra.mxu0 0.0
        %315 = vmatprep.subr.mxu0 0.0
        %316 = vmatpush1.msra.mxu0 0.0
        %317 = vmatprep.subr.mxu0 0.0
        %318 = vmatpush1.msra.mxu0 0.0
        %319 = vmatprep.subr.mxu0 0.0
        %320 = vmatpush1.msra.mxu0 0.0
        %321 = vmatprep.subr.mxu0 0.0
        %322 = vmatpush1.msra.mxu0 0.0
        %323 = vmatprep.subr.mxu0 0.0
        %324 = vmatpush1.msra.mxu0 0.0
        %325 = vmatprep.subr.mxu0 0.0
        %326 = vmatpush1.msra.mxu0 0.0
        %327 = vmatprep.subr.mxu0 0.0
        %328 = vmatpush1.msra.mxu0 0.0
        %329 = vmatprep.subr.mxu0 0.0
        %330 = vmatpush1.msra.mxu0 0.0
        %331 = vmatprep.subr.mxu0 0.0
        %332 = vmatpush1.msra.mxu0 0.0
        %333 = vmatprep.subr.mxu0 0.0
        %334 = vmatpush1.msra.mxu0 0.0
        %335 = vmatprep.subr.mxu0 0.0
        %336 = vmatpush1.msra.mxu0 0.0
        %337 = vmatprep.subr.mxu0 0.0
        %338 = vmatpush1.msra.mxu0 0.0
        %339 = vmatprep.subr.mxu0 0.0
        %340 = vmatpush1.msra.mxu0 0.0
        %341 = vmatprep.subr.mxu0 0.0
        %342 = vmatpush1.msra.mxu0 0.0
        %343 = vmatprep.subr.mxu0 0.0
        %344 = vmatpush1.msra.mxu0 0.0
        %345 = vmatprep.subr.mxu0 0.0
        %346 = vmatpush1.msra.mxu0 0.0
        %347 = vmatprep.subr.mxu0 0.0
        %348 = vmatpush1.msra.mxu0 0.0
        %349 = vmatprep.subr.mxu0 0.0
        %350 = vmatpush1.msra.mxu0 0.0
        %351 = vmatprep.subr.mxu0 0.0
        %352 = vmatpush1.msra.mxu0 0.0
        %353 = vmatprep.subr.mxu0 0.0
        %354 = vmatpush1.msra.mxu0 0.0
        %355 = vmatprep.subr.mxu0 0.0
        %356 = vmatpush1.msra.mxu0 0.0
        %357 = vmatprep.subr.mxu0 0.0
        %358 = vmatpush1.msra.mxu0 0.0
        %359 = vmatprep.mubr.f32.mxu0 0.0
        %360 = vmatmul.mubr.f32.gmra.mrb[0].mxu0 %v293
        %v361 = vpop.f32.mrb[0].mxu0
        %v362 = vadd.f32 %v290, %v361
        %v363 = vpop.f32.mrb[0].mxu0
        %364 = vdwg.mxu0
        %v365 = vmul.f32 %v362, 0.5
        %v366 = vmul.f32 %v365, 1.442695
        %v367 = vpow.pop %v366
        %369 = vrot.lane.b32.xlu0 %v199, 8
        %v370 = vpop.permute.xlu0 %369
        %v372 = vmul.f32 %v367, %v370
        %374 = vrot.lane.b32.xlu0 %v372, 120
        %v375 = vpop.permute.xlu0 %374
        %v377 = vadd.f32 %v362, %v375
        %v378 = vld [vmem:[#allocation2 + $0x68] sm:$0x3]
        %v379 = vld [vmem:[#allocation2 + $0x70] sm:$0x3]
        %v380 = vld [vmem:[#allocation2 + $0x78] sm:$0x1]
        %v381 = vlaneseq
        %v382 = vshrl.u32 %v381, 7
        %v383 = vsub.s32 0, %v382
        %v384 = vrot.slane %v378, %v383
        %v385 = vsub.f32 %v377, %v384
        %v386 = vlaneseq
        %v387 = vshrl.u32 %v386, 7
        %v388 = vsub.s32 0, %v387
        %v389 = vrot.slane %v379, %v388
        %v390 = vmul.f32 %v385, %v389
        %v391 = vmul.f32 %v390, %v390
        %vm392 = vcmask 64512
        %v393 = vsel %vm392, %v391, 0.0
        %394 = vadd.xlane.f32.xlu0 %v393
        %v395 = vpop.xlane.xlu0 %394
        %v396 = vmul.f32 %v395, -0.5
        %v397 = vlaneseq
        %v398 = vshrl.u32 %v397, 7
        %v399 = vsub.s32 0, %v398
        %v400 = vrot.slane %v380, %v399
        %v401 = vadd.f32 %v396, %v400
        %v402 = vlaneseq
        %v403 = vshrl.u32 %v402, 7
        %v404 = vsub.s32 1, %v403
        %v405 = vrot.slane %v378, %v404
        %v406 = vsub.f32 %v377, %v405
        %v407 = vlaneseq
        %v408 = vshrl.u32 %v407, 7
        %v409 = vsub.s32 1, %v408
        %v410 = vrot.slane %v379, %v409
        %v411 = vmul.f32 %v406, %v410
        %v412 = vmul.f32 %v411, %v411
        %v413 = vsel %vm392, %v412, 0.0
        %414 = vadd.xlane.f32.xlu0 %v413
        %v415 = vpop.xlane.xlu0 %414
        %v416 = vmul.f32 %v415, -0.5
        %v417 = vadd.f32 %v416, %v400
        %419 = vrot.lane.b32.xlu0 %v417, 127
        %v420 = vpop.permute.xlu0 %419
        %v422 = vmax.f32 %v401, %v420
        %v423 = vsub.f32 %v401, %v420
        %vm424 = vcmp.ne.f32.partialorder %v423, %v423
        %v425 = vadd.f32 %v401, %v420
        %v426 = vand.u32 2147483647, %v423
        %v427 = vsub.f32 0.0, %v426
        %v428 = vmul.f32 %v427, 1.442695
        %v429 = vpow.pop %v428
        %v430 = vadd.f32 %v429, 1.0
        %v431 = vlog2.pop %v430
        %v432 = vmul.f32 %v431, 0.6931472
        %v433 = vmul.f32 -0.5, %v429
        %v434 = vadd.f32 %v433, 1.0
        %v435 = vmul.f32 %v434, %v429
        %v436 = vand.u32 2147483647, %v429
        %vm437 = vcmp.lt.f32.partialorder %v436, 0.0004427343
        %v438 = vsel %vm437, %v435, %v432
        %v439 = vadd.f32 %v422, %v438
        %v440 = vsel %vm424, %v425, %v439
        %v441 = vsub.f32 0.0, %v440
        %v442 = vld [vmem:[#allocation2 + $0x40] sm:$0xff]
        %v443 = vld [vmem:[#allocation2 + $0x48] sm:$0x1]
        %v444 = vlaneseq
        %v445 = vshrl.u32 %v444, 7
        %v446 = vsub.s32 0, %v445
        %v447 = vrot.slane %v443, %v446
        %v449 = vsel %vm392, %v377, 0
        %451 = vmatprep.subr.mxu0 0.0
        %452 = vmatpush1.msra.mxu0 %v442
        %453 = vmatprep.subr.mxu0 0.0
        %454 = vmatpush1.msra.mxu0 0.0
        %455 = vmatprep.subr.mxu0 0.0
        %456 = vmatpush1.msra.mxu0 0.0
        %457 = vmatprep.subr.mxu0 0.0
        %458 = vmatpush1.msra.mxu0 0.0
        %459 = vmatprep.subr.mxu0 0.0
        %460 = vmatpush1.msra.mxu0 0.0
        %461 = vmatprep.subr.mxu0 0.0
        %462 = vmatpush1.msra.mxu0 0.0
        %463 = vmatprep.subr.mxu0 0.0
        %464 = vmatpush1.msra.mxu0 0.0
        %465 = vmatprep.subr.mxu0 0.0
        %466 = vmatpush1.msra.mxu0 0.0
        %467 = vmatprep.subr.mxu0 0.0
        %468 = vmatpush1.msra.mxu0 0.0
        %469 = vmatprep.subr.mxu0 0.0
        %470 = vmatpush1.msra.mxu0 0.0
        %471 = vmatprep.subr.mxu0 0.0
        %472 = vmatpush1.msra.mxu0 0.0
        %473 = vmatprep.subr.mxu0 0.0
        %474 = vmatpush1.msra.mxu0 0.0
        %475 = vmatprep.subr.mxu0 0.0
        %476 = vmatpush1.msra.mxu0 0.0
        %477 = vmatprep.subr.mxu0 0.0
        %478 = vmatpush1.msra.mxu0 0.0
        %479 = vmatprep.subr.mxu0 0.0
        %480 = vmatpush1.msra.mxu0 0.0
        %481 = vmatprep.subr.mxu0 0.0
        %482 = vmatpush1.msra.mxu0 0.0
        %483 = vmatprep.subr.mxu0 0.0
        %484 = vmatpush1.msra.mxu0 0.0
        %485 = vmatprep.subr.mxu0 0.0
        %486 = vmatpush1.msra.mxu0 0.0
        %487 = vmatprep.subr.mxu0 0.0
        %488 = vmatpush1.msra.mxu0 0.0
        %489 = vmatprep.subr.mxu0 0.0
        %490 = vmatpush1.msra.mxu0 0.0
        %491 = vmatprep.subr.mxu0 0.0
        %492 = vmatpush1.msra.mxu0 0.0
        %493 = vmatprep.subr.mxu0 0.0
        %494 = vmatpush1.msra.mxu0 0.0
        %495 = vmatprep.subr.mxu0 0.0
        %496 = vmatpush1.msra.mxu0 0.0
        %497 = vmatprep.subr.mxu0 0.0
        %498 = vmatpush1.msra.mxu0 0.0
        %499 = vmatprep.subr.mxu0 0.0
        %500 = vmatpush1.msra.mxu0 0.0
        %501 = vmatprep.subr.mxu0 0.0
        %502 = vmatpush1.msra.mxu0 0.0
        %503 = vmatprep.subr.mxu0 0.0
        %504 = vmatpush1.msra.mxu0 0.0
        %505 = vmatprep.subr.mxu0 0.0
        %506 = vmatpush1.msra.mxu0 0.0
        %507 = vmatprep.subr.mxu0 0.0
        %508 = vmatpush1.msra.mxu0 0.0
        %509 = vmatprep.subr.mxu0 0.0
        %510 = vmatpush1.msra.mxu0 0.0
        %511 = vmatprep.subr.mxu0 0.0
        %512 = vmatpush1.msra.mxu0 0.0
        %513 = vmatprep.subr.mxu0 0.0
        %514 = vmatpush1.msra.mxu0 0.0
        %515 = vmatprep.mubr.f32.mxu0 0.0
        %516 = vmatmul.mubr.f32.gmra.mrb[0].mxu0 %v449
        %v517 = vpop.f32.mrb[0].mxu0
        %v518 = vadd.f32 %v447, %v517
        %v519 = vpop.f32.mrb[0].mxu0
        %520 = vdwg.mxu0
        %v521 = vmax.f32 %v518, 0.0
        %v522 = vld [vmem:[#allocation2 + $0x50] sm:$0xff]
        %v523 = vld [vmem:[#allocation2 + $0x58] sm:$0xff]
        %v524 = vld [vmem:[#allocation2 + $0x60] sm:$0x1]
        %v525 = vlaneseq
        %v526 = vshrl.u32 %v525, 7
        %v527 = vsub.s32 0, %v526
        %v528 = vrot.slane %v524, %v527
        %v530 = vsel %vm291, %v521, 0
        %532 = vmatprep.subr.mxu0 0.0
        %533 = vmatpush1.msra.mxu0 %v522
        %534 = vmatprep.subr.mxu0 0.0
        %535 = vmatpush1.msra.mxu0 %v523
        %536 = vmatprep.subr.mxu0 0.0
        %537 = vmatpush1.msra.mxu0 0.0
        %538 = vmatprep.subr.mxu0 0.0
        %539 = vmatpush1.msra.mxu0 0.0
        %540 = vmatprep.subr.mxu0 0.0
        %541 = vmatpush1.msra.mxu0 0.0
        %542 = vmatprep.subr.mxu0 0.0
        %543 = vmatpush1.msra.mxu0 0.0
        %544 = vmatprep.subr.mxu0 0.0
        %545 = vmatpush1.msra.mxu0 0.0
        %546 = vmatprep.subr.mxu0 0.0
        %547 = vmatpush1.msra.mxu0 0.0
        %548 = vmatprep.subr.mxu0 0.0
        %549 = vmatpush1.msra.mxu0 0.0
        %550 = vmatprep.subr.mxu0 0.0
        %551 = vmatpush1.msra.mxu0 0.0
        %552 = vmatprep.subr.mxu0 0.0
        %553 = vmatpush1.msra.mxu0 0.0
        %554 = vmatprep.subr.mxu0 0.0
        %555 = vmatpush1.msra.mxu0 0.0
        %556 = vmatprep.subr.mxu0 0.0
        %557 = vmatpush1.msra.mxu0 0.0
        %558 = vmatprep.subr.mxu0 0.0
        %559 = vmatpush1.msra.mxu0 0.0
        %560 = vmatprep.subr.mxu0 0.0
        %561 = vmatpush1.msra.mxu0 0.0
        %562 = vmatprep.subr.mxu0 0.0
        %563 = vmatpush1.msra.mxu0 0.0
        %564 = vmatprep.subr.mxu0 0.0
        %565 = vmatpush1.msra.mxu0 0.0
        %566 = vmatprep.subr.mxu0 0.0
        %567 = vmatpush1.msra.mxu0 0.0
        %568 = vmatprep.subr.mxu0 0.0
        %569 = vmatpush1.msra.mxu0 0.0
        %570 = vmatprep.subr.mxu0 0.0
        %571 = vmatpush1.msra.mxu0 0.0
        %572 = vmatprep.subr.mxu0 0.0
        %573 = vmatpush1.msra.mxu0 0.0
        %574 = vmatprep.subr.mxu0 0.0
        %575 = vmatpush1.msra.mxu0 0.0
        %576 = vmatprep.subr.mxu0 0.0
        %577 = vmatpush1.msra.mxu0 0.0
        %578 = vmatprep.subr.mxu0 0.0
        %579 = vmatpush1.msra.mxu0 0.0
        %580 = vmatprep.subr.mxu0 0.0
        %581 = vmatpush1.msra.mxu0 0.0
        %582 = vmatprep.subr.mxu0 0.0
        %583 = vmatpush1.msra.mxu0 0.0
        %584 = vmatprep.subr.mxu0 0.0
        %585 = vmatpush1.msra.mxu0 0.0
        %586 = vmatprep.subr.mxu0 0.0
        %587 = vmatpush1.msra.mxu0 0.0
        %588 = vmatprep.subr.mxu0 0.0
        %589 = vmatpush1.msra.mxu0 0.0
        %590 = vmatprep.subr.mxu0 0.0
        %591 = vmatpush1.msra.mxu0 0.0
        %592 = vmatprep.subr.mxu0 0.0
        %593 = vmatpush1.msra.mxu0 0.0
        %594 = vmatprep.subr.mxu0 0.0
        %595 = vmatpush1.msra.mxu0 0.0
        %596 = vmatprep.mubr.f32.mxu0 0.0
        %597 = vmatmul.mubr.f32.gmra.mrb[0].mxu0 %v530
        %v598 = vpop.f32.mrb[0].mxu0
        %v599 = vadd.f32 %v528, %v598
        %v600 = vpop.f32.mrb[0].mxu0
        %601 = vdwg.mxu0
        %603 = vrot.lane.b32.xlu0 %v362, 32
        %v604 = vpop.permute.xlu0 %603
        %606 = vrot.lane.b32.xlu0 %v377, 48
        %v607 = vpop.permute.xlu0 %606
        %610 = vrot.lane.b32.xlu0 %v441, 56
        %v611 = vpop.permute.xlu0 %610
        %v613 = vsel %vm209, %v599, %v604
        %vm614 = vcmask 392192
        %v615 = vsel %vm614, %v613, %v607
        %vm616 = vcmask 457728
        %v617 = vsel %vm616, %v615, %v611
        %vm618 = vcmask 465920
        %v619 = vsel %vm618, %v617, 0.0
        %vm620 = vcmask 523264
        %621 = vst.msk [vmem:[%s189] sm:$0xff] %vm620, %v619
        %s622 = sand.u32 %s99, 1
        %s623 = scalar_lea.sflag [#allocation4], %s622
        %s624 = sand.u32 %s99, 1
        %s625 = smul.addr %s624, 8
        %s626 = scalar_lea.vmem [#allocation5], %s625
        // Predicated region
        $region37: #{tpu_custom_call.1} parent=31 // pred_check
          %p627 = pneg %p109
        $region38: #{tpu_custom_call.1} parent=31 // pred_check_branch
          %629 = sbr.rel (%p627) target = $region40
        $region39: #{tpu_custom_call.1} parent=31 // pred_region
          %s631 = ssub.s32 128, 128
          %632 = vsyncadd %s623, %s631
          %s633 = smul.addr %s18, 128
          %s634 = scalar_lea.hbm %s3, %s633
          %s636 = sshll.u32 %s626, 4
          %s637 = int_to_ptr.vmem [resolvable:$true] %s636
          %639 = dma.vmem_to_hbm [thread:$0]  %s637, 128, %s634, %s623
        $region40: #{tpu_custom_call.1} parent=31 // pred_fallthru
          _
      $region32: #{tpu_custom_call.1} parent=5 // pred_fallthru
        _
      %p640 = scmp.le.s32.totalorder 2, %s13
      // Predicated region
      $region41: #{tpu_custom_call.1} parent=5 // pred_check
        %p641 = pneg %p640
      $region42: #{tpu_custom_call.1} parent=5 // pred_check_branch
        %643 = sbr.rel (%p641) target = $region44
      $region43: #{tpu_custom_call.1} parent=5 // pred_region
        %s644 = ssub.s32 %s13, 2
        // Predicated region
        $region45: #{tpu_custom_call.1} parent=43 // pred_check
          %p645 = pneg %p115
        $region46: #{tpu_custom_call.1} parent=43 // pred_check_branch
          %647 = sbr.rel (%p645) target = $region48
        $region47: #{tpu_custom_call.1} parent=43 // pred_region
          %s648 = sand.u32 %s100, 1
          %s649 = scalar_lea.sflag [#allocation4], %s648
          %s650 = sand.u32 %s100, 1
          %s651 = smul.addr %s650, 8
          %s652 = scalar_lea.vmem [#allocation5], %s651
          %653 = dma.done %s649, 128
        $region48: #{tpu_custom_call.1} parent=43 // pred_fallthru
          _
      $region44: #{tpu_custom_call.1} parent=5 // pred_fallthru
        _
    $region6: #{tpu_custom_call.1} parent=1 // loop_footer
      %s17 = sadd.s32 1, %s13
    $region7: #{tpu_custom_call.1} parent=1 // loop_footer_branch
      %12 = sbr.rel target = $region3
    $region8: #{tpu_custom_call.1} parent=1 // loop_exit
      _
    %654 = vsyncpa [#allocation3], 1
    %s655 = scalar_lea.sflag [#allocation3], 1
    %656 = vsyncpa %s655, 1
    %657 = vsyncpa [#allocation4], 1
    %s658 = scalar_lea.sflag [#allocation4], 1
    %659 = vsyncpa %s658, 1

</llo_original>
